<compile_context>
chip_gen: v6e
topology: v6e:2x2x1
jax: 0.10.0
libtpu: 0.0.40
codegen_flags: <defaults>
</compile_context>

<pallas_src>
import jax
import jax.numpy as jnp
import numpy as np
from jax.experimental import pallas as pl
from jax.experimental.pallas import tpu as pltpu


def conv3x3_add_kernel(x1_ref, w_ref, b_ref, x2_ref, o_ref, xpad_ref):
    # x1_ref  : (N, H, W*Cin)        lane-packed input (NHWC with W,C fused)
    # w_ref   : (KH, W*Cin, W*Cout)  banded per-kernel-row weights
    # b_ref   : (1, W*Cout)          bias tiled along W
    # x2_ref  : (N, H, W*Cout)       residual, lane-packed
    # o_ref   : (N, H, W*Cout)       output, lane-packed (full 128-lane stores)
    # xpad_ref: (N, H+2, W*Cin)      VMEM scratch for height zero-padding
    N, H, WCin = x1_ref.shape
    KH = w_ref.shape[0]
    WCout = o_ref.shape[-1]

    # Height halo: zero the two boundary rows, copy the interior.  Width
    # padding needs no halo — it is folded into the band structure of w_ref.
    zrow = jnp.zeros((N, 1, WCin), jnp.float32)
    xpad_ref[:, 0:1, :] = zrow
    xpad_ref[:, H + 1:H + 2, :] = zrow
    xpad_ref[:, 1:H + 1, :] = x1_ref[...].astype(jnp.float32)

    # 3 MXU matmuls: (N*H, W*Cin) @ (W*Cin, W*Cout), f32 accumulation.
    acc = jnp.zeros((N * H, WCout), dtype=jnp.float32)
    for kh in range(KH):
        lhs = xpad_ref[:, kh:kh + H, :].reshape(N * H, WCin)
        acc = acc + jnp.dot(lhs, w_ref[kh], preferred_element_type=jnp.float32)

    acc = acc + b_ref[...]                                   # (1, W*Cout) broadcast
    out = acc.reshape(N, H, WCout) + x2_ref[...].astype(jnp.float32)
    o_ref[...] = out.astype(o_ref.dtype)                     # lane-dense store


def _pack_conv_params(weight_oihw, bias, W):
    """OIHW 3x3 conv weights -> per-kh banded (W*Cin, W*Cout) matmul weights."""
    Cout, Cin, KH, KW = weight_oihw.shape
    w_hwio = jnp.transpose(weight_oihw, (2, 3, 1, 0))        # (KH, KW, Cin, Cout)
    r = jnp.arange(W * Cin)
    win, ci = r // Cin, r % Cin                              # input column / channel
    c = jnp.arange(W * Cout)
    wout, co = c // Cout, c % Cout                           # output column / channel
    kw = win[:, None] - wout[None, :] + 1                    # padding = 1
    valid = (kw >= 0) & (kw < KW)
    kw_c = jnp.where(valid, kw, 0)
    # Wband[kh, win*Cin+ci, wout*Cout+co] = w_hwio[kh, win-wout+1, ci, co] (0 outside band)
    wband = w_hwio[:, kw_c, ci[:, None], co[None, :]]        # (KH, W*Cin, W*Cout)
    wband = wband * valid[None, :, :].astype(wband.dtype)
    bias_packed = jnp.tile(bias, W)[None, :]                 # (1, W*Cout)
    return wband, bias_packed


@jax.jit
def conv3x3_add(x1_nchw, x2_nchw, weight_oihw, bias):
    """Conv2d(Cin->Cout, k=3, s=1, p=1)(x1) + x2 ; NCHW in / NCHW out."""
    N, Cin, H, W = x1_nchw.shape
    Cout = weight_oihw.shape[0]

    # NCHW -> lane-packed NHWC glue (fused with param packing under jit).
    x1p = jnp.transpose(x1_nchw, (0, 2, 3, 1)).reshape(N, H, W * Cin)
    x2p = jnp.transpose(x2_nchw, (0, 2, 3, 1)).reshape(N, H, W * Cout)
    wband, bias_packed = _pack_conv_params(weight_oihw, bias, W)

    out_packed = pl.pallas_call(
        conv3x3_add_kernel,
        out_shape=jax.ShapeDtypeStruct((N, H, W * Cout), x1_nchw.dtype),
        in_specs=[
            pl.BlockSpec(memory_space=pltpu.MemorySpace.VMEM),
            pl.BlockSpec(memory_space=pltpu.MemorySpace.VMEM),
            pl.BlockSpec(memory_space=pltpu.MemorySpace.VMEM),
            pl.BlockSpec(memory_space=pltpu.MemorySpace.VMEM),
        ],
        out_specs=pl.BlockSpec(memory_space=pltpu.MemorySpace.VMEM),
        scratch_shapes=[pltpu.VMEM((N, H + 2, W * Cin), jnp.float32)],
    )(x1p, wband, bias_packed, x2p)

    # packed (N, H, W*Cout) -> NCHW
    return jnp.transpose(out_packed.reshape(N, H, W, Cout), (0, 3, 1, 2))


if __name__ == "__main__":
    key = jax.random.PRNGKey(0)
    k1, k2, kw_, kb = jax.random.split(key, 4)

    N, Cin, Cout, H, W = 2, 3, 8, 16, 16   # W * Cout = 128 -> lane-dense output

    x1 = jax.random.normal(k1, (N, Cin, H, W), dtype=jnp.float32)
    # x2 must have Cout channels for `conv(x1) + x2` to be well-defined.
    x2 = jax.random.normal(k2, (N, Cout, H, W), dtype=jnp.float32)

    fan_in = Cin * 3 * 3
    bound = 1.0 / np.sqrt(fan_in)
    weight = jax.random.uniform(
        kw_, (Cout, Cin, 3, 3), minval=-bound, maxval=bound, dtype=jnp.float32)
    bias = jax.random.uniform(
        kb, (Cout,), minval=-bound, maxval=bound, dtype=jnp.float32)

    out = conv3x3_add(x1, x2, weight, bias)
    out = jax.block_until_ready(out)

    # Reference check against XLA's conv (silent unless it fails).
    ref = jax.lax.conv_general_dilated(
        x1, weight, window_strides=(1, 1), padding=((1, 1), (1, 1)),
        dimension_numbers=("NCHW", "OIHW", "NCHW"),
    ) + bias.reshape(1, Cout, 1, 1) + x2
    np.testing.assert_allclose(np.asarray(out), np.asarray(ref),
                               rtol=1e-5, atol=1e-4)

    print("KERNEL_OK")
</pallas_src>

<mosaic_0001>
module attributes {stable_mosaic.version = 11 : i64} {
  func.func @conv3x3_add_kernel(%arg0: memref<2x16x48xf32, #tpu.memory_space<vmem>>, %arg1: memref<3x48x128xf32, #tpu.memory_space<vmem>>, %arg2: memref<1x128xf32, #tpu.memory_space<vmem>>, %arg3: memref<2x16x128xf32, #tpu.memory_space<vmem>>, %arg4: memref<2x16x128xf32, #tpu.memory_space<vmem>>, %arg5: memref<2x18x48xf32, #tpu.memory_space<vmem>>) attributes {dimension_semantics = [], scalar_prefetch = 0 : i64, scratch_operands = 1 : i64, tpu.core_type = #tpu.core_type<tc>} {
    %cst = arith.constant 0.000000e+00 : f32
    %0 = vector.broadcast %cst : f32 to vector<2x1x48xf32>
    %c0 = arith.constant 0 : index
    %c0_0 = arith.constant 0 : index
    %c0_1 = arith.constant 0 : index
    %1 = vector.load %arg5[%c0, %c0_0, %c0_1] : memref<2x18x48xf32, #tpu.memory_space<vmem>>, vector<2x1x48xf32>
    tpu.vector_store %arg5[%c0, %c0_0, %c0_1], %0 {strides = array<i32>} : memref<2x18x48xf32, #tpu.memory_space<vmem>>, vector<2x1x48xf32>,
    %c0_2 = arith.constant 0 : index
    %c17 = arith.constant 17 : index
    %c0_3 = arith.constant 0 : index
    %2 = vector.load %arg5[%c0_2, %c17, %c0_3] : memref<2x18x48xf32, #tpu.memory_space<vmem>>, vector<2x1x48xf32>
    tpu.vector_store %arg5[%c0_2, %c17, %c0_3], %0 {strides = array<i32>} : memref<2x18x48xf32, #tpu.memory_space<vmem>>, vector<2x1x48xf32>,
    %c0_4 = arith.constant 0 : index
    %c0_5 = arith.constant 0 : index
    %c0_6 = arith.constant 0 : index
    %3 = vector.load %arg0[%c0_4, %c0_5, %c0_6] : memref<2x16x48xf32, #tpu.memory_space<vmem>>, vector<2x16x48xf32>
    %c0_7 = arith.constant 0 : index
    %c1 = arith.constant 1 : index
    %c0_8 = arith.constant 0 : index
    %4 = vector.load %arg5[%c0_7, %c1, %c0_8] : memref<2x18x48xf32, #tpu.memory_space<vmem>>, vector<2x16x48xf32>
    tpu.vector_store %arg5[%c0_7, %c1, %c0_8], %3 {strides = array<i32>} : memref<2x18x48xf32, #tpu.memory_space<vmem>>, vector<2x16x48xf32>,
    %cst_9 = arith.constant 0.000000e+00 : f32
    %5 = vector.broadcast %cst_9 : f32 to vector<32x128xf32>
    %c0_10 = arith.constant 0 : index
    %c0_11 = arith.constant 0 : index
    %c0_12 = arith.constant 0 : index
    %6 = vector.load %arg5[%c0_10, %c0_11, %c0_12] : memref<2x18x48xf32, #tpu.memory_space<vmem>>, vector<2x16x48xf32>
    %7 = vector.shape_cast %6 : vector<2x16x48xf32> to vector<32x48xf32>
    %c0_13 = arith.constant 0 : index
    %c0_14 = arith.constant 0 : index
    %c0_15 = arith.constant 0 : index
    %8 = vector.load %arg1[%c0_13, %c0_14, %c0_15] : memref<3x48x128xf32, #tpu.memory_space<vmem>>, vector<1x48x128xf32>
    %9 = vector.shape_cast %8 : vector<1x48x128xf32> to vector<48x128xf32>
    %cst_16 = arith.constant dense<0.000000e+00> : vector<32x128xf32>
    %10 = tpu.matmul %7, %9, %cst_16 {dimension_numbers = #tpu.dot_dimension_numbers<[1], [0], [0], [1], [0, 0, 1, 1], [], []>} : vector<32x48xf32>, vector<48x128xf32>, vector<32x128xf32> -> vector<32x128xf32>
    %11 = arith.addf %5, %10 : vector<32x128xf32>
    %c0_17 = arith.constant 0 : index
    %c1_18 = arith.constant 1 : index
    %c0_19 = arith.constant 0 : index
    %12 = vector.load %arg5[%c0_17, %c1_18, %c0_19] : memref<2x18x48xf32, #tpu.memory_space<vmem>>, vector<2x16x48xf32>
    %13 = vector.shape_cast %12 : vector<2x16x48xf32> to vector<32x48xf32>
    %c1_20 = arith.constant 1 : index
    %c0_21 = arith.constant 0 : index
    %c0_22 = arith.constant 0 : index
    %14 = vector.load %arg1[%c1_20, %c0_21, %c0_22] : memref<3x48x128xf32, #tpu.memory_space<vmem>>, vector<1x48x128xf32>
    %15 = vector.shape_cast %14 : vector<1x48x128xf32> to vector<48x128xf32>
    %cst_23 = arith.constant dense<0.000000e+00> : vector<32x128xf32>
    %16 = tpu.matmul %13, %15, %cst_23 {dimension_numbers = #tpu.dot_dimension_numbers<[1], [0], [0], [1], [0, 0, 1, 1], [], []>} : vector<32x48xf32>, vector<48x128xf32>, vector<32x128xf32> -> vector<32x128xf32>
    %17 = arith.addf %11, %16 : vector<32x128xf32>
    %c0_24 = arith.constant 0 : index
    %c2 = arith.constant 2 : index
    %c0_25 = arith.constant 0 : index
    %18 = vector.load %arg5[%c0_24, %c2, %c0_25] : memref<2x18x48xf32, #tpu.memory_space<vmem>>, vector<2x16x48xf32>
    %19 = vector.shape_cast %18 : vector<2x16x48xf32> to vector<32x48xf32>
    %c2_26 = arith.constant 2 : index
    %c0_27 = arith.constant 0 : index
    %c0_28 = arith.constant 0 : index
    %20 = vector.load %arg1[%c2_26, %c0_27, %c0_28] : memref<3x48x128xf32, #tpu.memory_space<vmem>>, vector<1x48x128xf32>
    %21 = vector.shape_cast %20 : vector<1x48x128xf32> to vector<48x128xf32>
    %cst_29 = arith.constant dense<0.000000e+00> : vector<32x128xf32>
    %22 = tpu.matmul %19, %21, %cst_29 {dimension_numbers = #tpu.dot_dimension_numbers<[1], [0], [0], [1], [0, 0, 1, 1], [], []>} : vector<32x48xf32>, vector<48x128xf32>, vector<32x128xf32> -> vector<32x128xf32>
    %23 = arith.addf %17, %22 : vector<32x128xf32>
    %c0_30 = arith.constant 0 : index
    %c0_31 = arith.constant 0 : index
    %24 = vector.load %arg2[%c0_30, %c0_31] : memref<1x128xf32, #tpu.memory_space<vmem>>, vector<1x128xf32>
    %25 = vector.broadcast %24 : vector<1x128xf32> to vector<32x128xf32>
    %26 = arith.addf %23, %25 : vector<32x128xf32>
    %27 = vector.shape_cast %26 : vector<32x128xf32> to vector<2x16x128xf32>
    %c0_32 = arith.constant 0 : index
    %c0_33 = arith.constant 0 : index
    %c0_34 = arith.constant 0 : index
    %28 = vector.load %arg3[%c0_32, %c0_33, %c0_34] : memref<2x16x128xf32, #tpu.memory_space<vmem>>, vector<2x16x128xf32>
    %29 = arith.addf %27, %28 : vector<2x16x128xf32>
    %c0_35 = arith.constant 0 : index
    %c0_36 = arith.constant 0 : index
    %c0_37 = arith.constant 0 : index
    %30 = vector.load %arg4[%c0_35, %c0_36, %c0_37] : memref<2x16x128xf32, #tpu.memory_space<vmem>>, vector<2x16x128xf32>
    tpu.vector_store %arg4[%c0_35, %c0_36, %c0_37], %29 {strides = array<i32>} : memref<2x16x128xf32, #tpu.memory_space<vmem>>, vector<2x16x128xf32>,
    return
  }
}

</mosaic_0001>

<llo_original>
// kernel: tile.8
$region0: #{tile.8}
  #allocation0 [shape = 's32[1]{0}', space=sflag, size = 0x4, scoped, tag = 'scoped memory for tile.8']
  %s0 = inlined_call_operand.vmem [shape: f32[8], index: 0, kind: input, shape index: {}]
  %s1 = inlined_call_operand.vmem [shape: f32[16,8], index: 1, kind: output, shape index: {}]
  // Predicated region
  $region2: #{tile.8} parent=0 // pred_check
    _
  $region3: #{tile.8} parent=0 // pred_check_branch
    %3 = sbr.rel (0) target = $region5
  $region4: #{tile.8} parent=0 // pred_region
    _
  $region5: #{tile.8} parent=0 // pred_fallthru
    _
  %v4 = vld [vmem:[%s0] ss:$0 sm:$0xff]
  %5 = vst [vmem:[%s1] sm:$0xff] %v4
  %s6 = scalar_lea.vmem %s1, 8
  %7 = vst [vmem:[%s6] sm:$0xff] %v4

// kernel: tile.9
$region0: #{tile.9}
  %s0 = inlined_call_operand.vmem [shape: f32[16,8], index: 0, kind: input, shape index: {}]
  %s1 = inlined_call_operand.vmem [shape: f32[1,128], index: 1, kind: output, shape index: {}]
  $region1: #{tile.9} parent=0
    #allocation0 [shape = 'u8[4096]{0}', space=vmem, size = 0x1000, scoped, tag = 'scoped mem for output reshape']
    %v2 = vld [vmem:[%s0] sm:$0x1]
    %vm3 = vcmask 64512
    %4 = vst.msk [vmem:[#allocation0] sm:$0x1] %vm3, %v2
    %s5 = scalar_lea.vmem %s0, 15
    %v6 = vld [vmem:[%s5] sm:$0x1]
    %7 = vrot.lane.b32.xlu0 %v6, 120
    %v8 = vpop.permute.xlu0 %7
    %vm9 = vcmask 1048512
    %10 = vst.msk [vmem:[#allocation0] sm:$0x1] %vm9, %v8
    %s11 = scalar_lea.vmem %s0, 14
    %v12 = vld [vmem:[%s11] sm:$0x1]
    %13 = vrot.lane.b32.xlu0 %v12, 112
    %v14 = vpop.permute.xlu0 %13
    %vm15 = vcmask 982912
    %16 = vst.msk [vmem:[#allocation0] sm:$0x1] %vm15, %v14
    %s17 = scalar_lea.vmem %s0, 13
    %v18 = vld [vmem:[%s17] sm:$0x1]
    %19 = vrot.lane.b32.xlu0 %v18, 104
    %v20 = vpop.permute.xlu0 %19
    %vm21 = vcmask 917312
    %22 = vst.msk [vmem:[#allocation0] sm:$0x1] %vm21, %v20
    %s23 = scalar_lea.vmem %s0, 12
    %v24 = vld [vmem:[%s23] sm:$0x1]
    %25 = vrot.lane.b32.xlu0 %v24, 96
    %v26 = vpop.permute.xlu0 %25
    %vm27 = vcmask 851712
    %28 = vst.msk [vmem:[#allocation0] sm:$0x1] %vm27, %v26
    %s29 = scalar_lea.vmem %s0, 11
    %v30 = vld [vmem:[%s29] sm:$0x1]
    %31 = vrot.lane.b32.xlu0 %v30, 88
    %v32 = vpop.permute.xlu0 %31
    %vm33 = vcmask 786112
    %34 = vst.msk [vmem:[#allocation0] sm:$0x1] %vm33, %v32
    %s35 = scalar_lea.vmem %s0, 10
    %v36 = vld [vmem:[%s35] sm:$0x1]
    %37 = vrot.lane.b32.xlu0 %v36, 80
    %v38 = vpop.permute.xlu0 %37
    %vm39 = vcmask 720512
    %40 = vst.msk [vmem:[#allocation0] sm:$0x1] %vm39, %v38
    %s41 = scalar_lea.vmem %s0, 9
    %v42 = vld [vmem:[%s41] sm:$0x1]
    %43 = vrot.lane.b32.xlu0 %v42, 72
    %v44 = vpop.permute.xlu0 %43
    %vm45 = vcmask 654912
    %46 = vst.msk [vmem:[#allocation0] sm:$0x1] %vm45, %v44
    %s47 = scalar_lea.vmem %s0, 8
    %v48 = vld [vmem:[%s47] sm:$0x1]
    %49 = vrot.lane.b32.xlu0 %v48, 64
    %v50 = vpop.permute.xlu0 %49
    %vm51 = vcmask 589312
    %52 = vst.msk [vmem:[#allocation0] sm:$0x1] %vm51, %v50
    %s53 = scalar_lea.vmem %s0, 7
    %v54 = vld [vmem:[%s53] sm:$0x1]
    %55 = vrot.lane.b32.xlu0 %v54, 56
    %v56 = vpop.permute.xlu0 %55
    %vm57 = vcmask 523712
    %58 = vst.msk [vmem:[#allocation0] sm:$0x1] %vm57, %v56
    %s59 = scalar_lea.vmem %s0, 6
    %v60 = vld [vmem:[%s59] sm:$0x1]
    %61 = vrot.lane.b32.xlu0 %v60, 48
    %v62 = vpop.permute.xlu0 %61
    %vm63 = vcmask 458112
    %64 = vst.msk [vmem:[#allocation0] sm:$0x1] %vm63, %v62
    %s65 = scalar_lea.vmem %s0, 5
    %v66 = vld [vmem:[%s65] sm:$0x1]
    %67 = vrot.lane.b32.xlu0 %v66, 40
    %v68 = vpop.permute.xlu0 %67
    %vm69 = vcmask 392512
    %70 = vst.msk [vmem:[#allocation0] sm:$0x1] %vm69, %v68
    %s71 = scalar_lea.vmem %s0, 4
    %v72 = vld [vmem:[%s71] sm:$0x1]
    %73 = vrot.lane.b32.xlu0 %v72, 32
    %v74 = vpop.permute.xlu0 %73
    %vm75 = vcmask 326912
    %76 = vst.msk [vmem:[#allocation0] sm:$0x1] %vm75, %v74
    %s77 = scalar_lea.vmem %s0, 3
    %v78 = vld [vmem:[%s77] sm:$0x1]
    %79 = vrot.lane.b32.xlu0 %v78, 24
    %v80 = vpop.permute.xlu0 %79
    %vm81 = vcmask 261312
    %82 = vst.msk [vmem:[#allocation0] sm:$0x1] %vm81, %v80
    %s83 = scalar_lea.vmem %s0, 2
    %v84 = vld [vmem:[%s83] sm:$0x1]
    %85 = vrot.lane.b32.xlu0 %v84, 16
    %v86 = vpop.permute.xlu0 %85
    %vm87 = vcmask 195712
    %88 = vst.msk [vmem:[#allocation0] sm:$0x1] %vm87, %v86
    %s89 = scalar_lea.vmem %s0, 1
    %v90 = vld [vmem:[%s89] sm:$0x1]
    %91 = vrot.lane.b32.xlu0 %v90, 8
    %v92 = vpop.permute.xlu0 %91
    %vm93 = vcmask 130112
    %94 = vst.msk [vmem:[#allocation0] sm:$0x1] %vm93, %v92
    %s96 = sshll.u32 1, 1
    %s97 = ssub.s32 %s96, 1
    %v99 = vld [vmem:[#allocation0] sm:%s97]
    %s100 = sshll.u32 1, 1
    %s101 = ssub.s32 %s100, 1
    %102 = vst [vmem:[%s1] sm:%s101] %v99

// kernel: conv3x3_add.1
$region0: #{conv3x3_add.1}
  #allocation0 [shape = 'u32[]', space=smem, size = 0x4, offset = 0x4, fixed_abs, tag = 'smem constant byte address 0x4 - core index']
  #allocation1 [shape = 'u32[144,128]{1,0:T(1,128)}', space=vmem, size = 0x12000, scoped, tag = 'internal scratch']
  #allocation2 [shape = 'f32[2,18,48]{2,1,0:T(8,128)}', space=vmem, size = 0x6000, scoped, tag = 'scratch operand']
  %s0 = inlined_call_operand.vmem [shape: f32[2,16,48], index: 0, kind: input, shape index: {}]
  %s1 = inlined_call_operand.vmem [shape: f32[3,48,128], index: 1, kind: input, shape index: {}]
  %s2 = inlined_call_operand.vmem [shape: f32[1,128], index: 2, kind: input, shape index: {}]
  %s3 = inlined_call_operand.vmem [shape: f32[2,16,128], index: 3, kind: input, shape index: {}]
  %s4 = inlined_call_operand.vmem [shape: f32[2,16,128], index: 4, kind: output, shape index: {}]
  %s5 = sld [smem:[#allocation0]]
  $region26: #{conv3x3_add.1} parent=0
    _
  %s7 = ssub.s32 1, %s5
  %s8 = scalar_select 0, %s7, %s5
  // Predicated region
  $region2: #{conv3x3_add.1} parent=0 // pred_check
    _
  $region3: #{conv3x3_add.1} parent=0 // pred_check_branch
    %10 = sbr.rel (0) target = $region5
  $region4: #{conv3x3_add.1} parent=0 // pred_region
    _
  $region5: #{conv3x3_add.1} parent=0 // pred_fallthru
    _
  // Predicated region
  $region6: #{conv3x3_add.1} parent=0 // pred_check
    _
  $region7: #{conv3x3_add.1} parent=0 // pred_check_branch
    %12 = sbr.rel (0) target = $region9
  $region8: #{conv3x3_add.1} parent=0 // pred_region
    _
  $region9: #{conv3x3_add.1} parent=0 // pred_fallthru
    _
  // Predicated region
  $region10: #{conv3x3_add.1} parent=0 // pred_check
    _
  $region11: #{conv3x3_add.1} parent=0 // pred_check_branch
    %14 = sbr.rel (0) target = $region13
  $region12: #{conv3x3_add.1} parent=0 // pred_region
    _
  $region13: #{conv3x3_add.1} parent=0 // pred_fallthru
    _
  // Predicated region
  $region14: #{conv3x3_add.1} parent=0 // pred_check
    _
  $region15: #{conv3x3_add.1} parent=0 // pred_check_branch
    %16 = sbr.rel (0) target = $region17
  $region16: #{conv3x3_add.1} parent=0 // pred_region
    _
  $region17: #{conv3x3_add.1} parent=0 // pred_fallthru
    _
  %vm17 = vcmask 385024
  %18 = vst.msk [vmem:[#allocation2] sm:$0x1] %vm17, 0.0
  %19 = vst.msk [vmem:[#allocation2 + $0x18] sm:$0x1] %vm17, 0.0
  %20 = vst.msk [vmem:[#allocation2 + $0x11] sm:$0x1] %vm17, 0.0
  %21 = vst.msk [vmem:[#allocation2 + $0x29] sm:$0x1] %vm17, 0.0
  %v22 = vld [vmem:[%s0] sm:$0xff]
  %v23 = vld [vmem:[%s0 + $0x8] sm:$0xff]
  %v24 = vld [vmem:[%s0 + $0x10] sm:$0xff]
  %v25 = vld [vmem:[%s0 + $0x18] sm:$0xff]
  %vm26 = vcmask 392192
  %27 = vst.msk [vmem:[#allocation2 + $0x1] sm:$0xff] %vm26, %v22
  %28 = vst.msk [vmem:[#allocation2 + $0x9] sm:$0xff] %vm26, %v23
  %29 = vst.msk [vmem:[#allocation2 + $0x19] sm:$0xff] %vm26, %v24
  %30 = vst.msk [vmem:[#allocation2 + $0x21] sm:$0xff] %vm26, %v25
  %v31 = vld [vmem:[#allocation2] sm:$0xff]
  %v32 = vld [vmem:[#allocation2 + $0x8] sm:$0xff]
  %v33 = vld [vmem:[#allocation2 + $0x18] sm:$0xff]
  %v34 = vld [vmem:[#allocation2 + $0x20] sm:$0xff]
  %v35 = vld [vmem:[%s1] sm:$0xff]
  %v36 = vld [vmem:[%s1 + $0x8] sm:$0xff]
  %v37 = vld [vmem:[%s1 + $0x10] sm:$0xff]
  %v38 = vld [vmem:[%s1 + $0x18] sm:$0xff]
  %v39 = vld [vmem:[%s1 + $0x20] sm:$0xff]
  %v40 = vld [vmem:[%s1 + $0x28] sm:$0xff]
  %v41 = vld [vmem:[#allocation2 + $0x1] sm:$0xff]
  %v42 = vld [vmem:[#allocation2 + $0x9] sm:$0xff]
  %v43 = vld [vmem:[#allocation2 + $0x19] sm:$0xff]
  %v44 = vld [vmem:[#allocation2 + $0x21] sm:$0xff]
  %s45 = scalar_lea.vmem %s1, 48
  %v46 = vld [vmem:[%s45] sm:$0xff]
  %v47 = vld [vmem:[%s45 + $0x8] sm:$0xff]
  %v48 = vld [vmem:[%s45 + $0x10] sm:$0xff]
  %v49 = vld [vmem:[%s45 + $0x18] sm:$0xff]
  %v50 = vld [vmem:[%s45 + $0x20] sm:$0xff]
  %v51 = vld [vmem:[%s45 + $0x28] sm:$0xff]
  %v53 = vsel %vm26, %v41, 0
  %v56 = vsel %vm26, %v42, 0
  %v59 = vsel %vm26, %v43, 0
  %v62 = vsel %vm26, %v44, 0
  %64 = vmatprep.subr.mxu0 0.0
  %65 = vmatpush1.msra.mxu0 0.0
  %66 = vmatprep.subr.mxu0 0.0
  %67 = vmatpush1.msra.mxu0 0.0
  %68 = vmatprep.subr.mxu0 0.0
  %69 = vmatpush1.msra.mxu0 0.0
  %70 = vmatprep.subr.mxu0 0.0
  %71 = vmatpush1.msra.mxu0 0.0
  %72 = vmatprep.subr.mxu0 0.0
  %73 = vmatpush1.msra.mxu0 0.0
  %74 = vmatprep.subr.mxu0 0.0
  %75 = vmatpush1.msra.mxu0 0.0
  %76 = vmatprep.subr.mxu0 0.0
  %77 = vmatpush1.msra.mxu0 0.0
  %78 = vmatprep.subr.mxu0 0.0
  %79 = vmatpush1.msra.mxu0 0.0
  %80 = vmatprep.subr.mxu0 0.0
  %81 = vmatpush1.msra.mxu0 0.0
  %82 = vmatprep.subr.mxu0 0.0
  %83 = vmatpush1.msra.mxu0 0.0
  %84 = vmatprep.subr.mxu0 0.0
  %85 = vmatpush1.msra.mxu0 %v51
  %86 = vmatprep.subr.mxu0 0.0
  %87 = vmatpush1.msra.mxu0 %v50
  %88 = vmatprep.subr.mxu0 0.0
  %89 = vmatpush1.msra.mxu0 %v49
  %90 = vmatprep.subr.mxu0 0.0
  %91 = vmatpush1.msra.mxu0 %v48
  %92 = vmatprep.subr.mxu0 0.0
  %93 = vmatpush1.msra.mxu0 %v47
  %94 = vmatprep.subr.mxu0 0.0
  %95 = vmatpush1.msra.mxu0 %v46
  %96 = vmatprep.subr.mxu0 0.0
  %97 = vmatpush2.msra.mxu0 0.0
  %98 = vmatprep.subr.mxu0 0.0
  %99 = vmatpush2.msra.mxu0 0.0
  %100 = vmatprep.subr.mxu0 0.0
  %101 = vmatpush2.msra.mxu0 0.0
  %102 = vmatprep.subr.mxu0 0.0
  %103 = vmatpush2.msra.mxu0 0.0
  %104 = vmatprep.subr.mxu0 0.0
  %105 = vmatpush2.msra.mxu0 0.0
  %106 = vmatprep.subr.mxu0 0.0
  %107 = vmatpush2.msra.mxu0 0.0
  %108 = vmatprep.subr.mxu0 0.0
  %109 = vmatpush2.msra.mxu0 0.0
  %110 = vmatprep.subr.mxu0 0.0
  %111 = vmatpush2.msra.mxu0 0.0
  %112 = vmatprep.subr.mxu0 0.0
  %113 = vmatpush2.msra.mxu0 0.0
  %114 = vmatprep.subr.mxu0 0.0
  %115 = vmatpush2.msra.mxu0 0.0
  %116 = vmatprep.subr.mxu0 0.0
  %117 = vmatpush2.msra.mxu0 0.0
  %118 = vmatprep.subr.mxu0 0.0
  %119 = vmatpush2.msra.mxu0 0.0
  %120 = vmatprep.subr.mxu0 0.0
  %121 = vmatpush2.msra.mxu0 0.0
  %122 = vmatprep.subr.mxu0 0.0
  %123 = vmatpush2.msra.mxu0 0.0
  %124 = vmatprep.subr.mxu0 0.0
  %125 = vmatpush2.msra.mxu0 0.0
  %126 = vmatprep.subr.mxu0 0.0
  %127 = vmatpush2.msra.mxu0 0.0
  %128 = vmatprep.mubr.f32.mxu0 0.0
  %129 = vmatmul.mubr.f32.gmra.mxu0 %v53
  %v130 = vpop.f32.mrf.mxu0
  %v131 = vadd.f32 0.0, %v130
  %v132 = vpop.f32.mrf.mxu0
  %133 = vmatprep.mubr.f32.mxu0 0.0
  %134 = vmatmul.mubr.f32.gmra.mxu0 %v56
  %v135 = vpop.f32.mrf.mxu0
  %v136 = vadd.f32 0.0, %v135
  %v137 = vpop.f32.mrf.mxu0
  %138 = vmatprep.mubr.f32.mxu0 0.0
  %139 = vmatmul.mubr.f32.gmra.mxu0 %v59
  %v140 = vpop.f32.mrf.mxu0
  %v141 = vadd.f32 0.0, %v140
  %v142 = vpop.f32.mrf.mxu0
  %143 = vmatprep.mubr.f32.mxu0 0.0
  %144 = vmatmul.mubr.f32.gmra.mxu0 %v62
  %v145 = vpop.f32.mrf.mxu0
  %v146 = vadd.f32 0.0, %v145
  %v147 = vpop.f32.mrf.mxu0
  %148 = vdwg.mxu0
  %v150 = vsel %vm26, %v31, 0
  %v153 = vsel %vm26, %v32, 0
  %v156 = vsel %vm26, %v33, 0
  %v159 = vsel %vm26, %v34, 0
  %161 = vmatprep.subr.mxu0 0.0
  %162 = vmatpush1.msra.mxu0 0.0
  %163 = vmatprep.subr.mxu0 0.0
  %164 = vmatpush1.msra.mxu0 0.0
  %165 = vmatprep.subr.mxu0 0.0
  %166 = vmatpush1.msra.mxu0 0.0
  %167 = vmatprep.subr.mxu0 0.0
  %168 = vmatpush1.msra.mxu0 0.0
  %169 = vmatprep.subr.mxu0 0.0
  %170 = vmatpush1.msra.mxu0 0.0
  %171 = vmatprep.subr.mxu0 0.0
  %172 = vmatpush1.msra.mxu0 0.0
  %173 = vmatprep.subr.mxu0 0.0
  %174 = vmatpush1.msra.mxu0 0.0
  %175 = vmatprep.subr.mxu0 0.0
  %176 = vmatpush1.msra.mxu0 0.0
  %177 = vmatprep.subr.mxu0 0.0
  %178 = vmatpush1.msra.mxu0 0.0
  %179 = vmatprep.subr.mxu0 0.0
  %180 = vmatpush1.msra.mxu0 0.0
  %181 = vmatprep.subr.mxu0 0.0
  %182 = vmatpush1.msra.mxu0 %v40
  %183 = vmatprep.subr.mxu0 0.0
  %184 = vmatpush1.msra.mxu0 %v39
  %185 = vmatprep.subr.mxu0 0.0
  %186 = vmatpush1.msra.mxu0 %v38
  %187 = vmatprep.subr.mxu0 0.0
  %188 = vmatpush1.msra.mxu0 %v37
  %189 = vmatprep.subr.mxu0 0.0
  %190 = vmatpush1.msra.mxu0 %v36
  %191 = vmatprep.subr.mxu0 0.0
  %192 = vmatpush1.msra.mxu0 %v35
  %193 = vmatprep.subr.mxu0 0.0
  %194 = vmatpush2.msra.mxu0 0.0
  %195 = vmatprep.subr.mxu0 0.0
  %196 = vmatpush2.msra.mxu0 0.0
  %197 = vmatprep.subr.mxu0 0.0
  %198 = vmatpush2.msra.mxu0 0.0
  %199 = vmatprep.subr.mxu0 0.0
  %200 = vmatpush2.msra.mxu0 0.0
  %201 = vmatprep.subr.mxu0 0.0
  %202 = vmatpush2.msra.mxu0 0.0
  %203 = vmatprep.subr.mxu0 0.0
  %204 = vmatpush2.msra.mxu0 0.0
  %205 = vmatprep.subr.mxu0 0.0
  %206 = vmatpush2.msra.mxu0 0.0
  %207 = vmatprep.subr.mxu0 0.0
  %208 = vmatpush2.msra.mxu0 0.0
  %209 = vmatprep.subr.mxu0 0.0
  %210 = vmatpush2.msra.mxu0 0.0
  %211 = vmatprep.subr.mxu0 0.0
  %212 = vmatpush2.msra.mxu0 0.0
  %213 = vmatprep.subr.mxu0 0.0
  %214 = vmatpush2.msra.mxu0 0.0
  %215 = vmatprep.subr.mxu0 0.0
  %216 = vmatpush2.msra.mxu0 0.0
  %217 = vmatprep.subr.mxu0 0.0
  %218 = vmatpush2.msra.mxu0 0.0
  %219 = vmatprep.subr.mxu0 0.0
  %220 = vmatpush2.msra.mxu0 0.0
  %221 = vmatprep.subr.mxu0 0.0
  %222 = vmatpush2.msra.mxu0 0.0
  %223 = vmatprep.subr.mxu0 0.0
  %224 = vmatpush2.msra.mxu0 0.0
  %225 = vmatprep.mubr.f32.mxu0 0.0
  %226 = vmatmul.mubr.f32.gmra.mxu0 %v150
  %v227 = vpop.f32.mrf.mxu0
  %v228 = vadd.f32 %v131, %v227
  %v229 = vpop.f32.mrf.mxu0
  %230 = vmatprep.mubr.f32.mxu0 0.0
  %231 = vmatmul.mubr.f32.gmra.mxu0 %v153
  %v232 = vpop.f32.mrf.mxu0
  %v233 = vadd.f32 %v136, %v232
  %v234 = vpop.f32.mrf.mxu0
  %235 = vmatprep.mubr.f32.mxu0 0.0
  %236 = vmatmul.mubr.f32.gmra.mxu0 %v156
  %v237 = vpop.f32.mrf.mxu0
  %v238 = vadd.f32 %v141, %v237
  %v239 = vpop.f32.mrf.mxu0
  %240 = vmatprep.mubr.f32.mxu0 0.0
  %241 = vmatmul.mubr.f32.gmra.mxu0 %v159
  %v242 = vpop.f32.mrf.mxu0
  %v243 = vadd.f32 %v146, %v242
  %v244 = vpop.f32.mrf.mxu0
  %245 = vdwg.mxu0
  %v246 = vld [vmem:[#allocation2 + $0x2] sm:$0xff]
  %v247 = vld [vmem:[#allocation2 + $0xa] sm:$0xff]
  %v248 = vld [vmem:[#allocation2 + $0x1a] sm:$0xff]
  %v249 = vld [vmem:[#allocation2 + $0x22] sm:$0xff]
  %s250 = scalar_lea.vmem %s1, 96
  %v251 = vld [vmem:[%s250] sm:$0xff]
  %v252 = vld [vmem:[%s250 + $0x8] sm:$0xff]
  %v253 = vld [vmem:[%s250 + $0x10] sm:$0xff]
  %v254 = vld [vmem:[%s250 + $0x18] sm:$0xff]
  %v255 = vld [vmem:[%s250 + $0x20] sm:$0xff]
  %v256 = vld [vmem:[%s250 + $0x28] sm:$0xff]
  %v258 = vsel %vm26, %v246, 0
  %v261 = vsel %vm26, %v247, 0
  %v264 = vsel %vm26, %v248, 0
  %v267 = vsel %vm26, %v249, 0
  %269 = vmatprep.subr.mxu0 0.0
  %270 = vmatpush1.msra.mxu0 0.0
  %271 = vmatprep.subr.mxu0 0.0
  %272 = vmatpush1.msra.mxu0 0.0
  %273 = vmatprep.subr.mxu0 0.0
  %274 = vmatpush1.msra.mxu0 0.0
  %275 = vmatprep.subr.mxu0 0.0
  %276 = vmatpush1.msra.mxu0 0.0
  %277 = vmatprep.subr.mxu0 0.0
  %278 = vmatpush1.msra.mxu0 0.0
  %279 = vmatprep.subr.mxu0 0.0
  %280 = vmatpush1.msra.mxu0 0.0
  %281 = vmatprep.subr.mxu0 0.0
  %282 = vmatpush1.msra.mxu0 0.0
  %283 = vmatprep.subr.mxu0 0.0
  %284 = vmatpush1.msra.mxu0 0.0
  %285 = vmatprep.subr.mxu0 0.0
  %286 = vmatpush1.msra.mxu0 0.0
  %287 = vmatprep.subr.mxu0 0.0
  %288 = vmatpush1.msra.mxu0 0.0
  %289 = vmatprep.subr.mxu0 0.0
  %290 = vmatpush1.msra.mxu0 %v256
  %291 = vmatprep.subr.mxu0 0.0
  %292 = vmatpush1.msra.mxu0 %v255
  %293 = vmatprep.subr.mxu0 0.0
  %294 = vmatpush1.msra.mxu0 %v254
  %295 = vmatprep.subr.mxu0 0.0
  %296 = vmatpush1.msra.mxu0 %v253
  %297 = vmatprep.subr.mxu0 0.0
  %298 = vmatpush1.msra.mxu0 %v252
  %299 = vmatprep.subr.mxu0 0.0
  %300 = vmatpush1.msra.mxu0 %v251
  %301 = vmatprep.subr.mxu0 0.0
  %302 = vmatpush2.msra.mxu0 0.0
  %303 = vmatprep.subr.mxu0 0.0
  %304 = vmatpush2.msra.mxu0 0.0
  %305 = vmatprep.subr.mxu0 0.0
  %306 = vmatpush2.msra.mxu0 0.0
  %307 = vmatprep.subr.mxu0 0.0
  %308 = vmatpush2.msra.mxu0 0.0
  %309 = vmatprep.subr.mxu0 0.0
  %310 = vmatpush2.msra.mxu0 0.0
  %311 = vmatprep.subr.mxu0 0.0
  %312 = vmatpush2.msra.mxu0 0.0
  %313 = vmatprep.subr.mxu0 0.0
  %314 = vmatpush2.msra.mxu0 0.0
  %315 = vmatprep.subr.mxu0 0.0
  %316 = vmatpush2.msra.mxu0 0.0
  %317 = vmatprep.subr.mxu0 0.0
  %318 = vmatpush2.msra.mxu0 0.0
  %319 = vmatprep.subr.mxu0 0.0
  %320 = vmatpush2.msra.mxu0 0.0
  %321 = vmatprep.subr.mxu0 0.0
  %322 = vmatpush2.msra.mxu0 0.0
  %323 = vmatprep.subr.mxu0 0.0
  %324 = vmatpush2.msra.mxu0 0.0
  %325 = vmatprep.subr.mxu0 0.0
  %326 = vmatpush2.msra.mxu0 0.0
  %327 = vmatprep.subr.mxu0 0.0
  %328 = vmatpush2.msra.mxu0 0.0
  %329 = vmatprep.subr.mxu0 0.0
  %330 = vmatpush2.msra.mxu0 0.0
  %331 = vmatprep.subr.mxu0 0.0
  %332 = vmatpush2.msra.mxu0 0.0
  %333 = vmatprep.mubr.f32.mxu0 0.0
  %334 = vmatmul.mubr.f32.gmra.mxu0 %v258
  %v335 = vpop.f32.mrf.mxu0
  %v336 = vadd.f32 0.0, %v335
  %v337 = vpop.f32.mrf.mxu0
  %338 = vmatprep.mubr.f32.mxu0 0.0
  %339 = vmatmul.mubr.f32.gmra.mxu0 %v261
  %v340 = vpop.f32.mrf.mxu0
  %v341 = vadd.f32 0.0, %v340
  %v342 = vpop.f32.mrf.mxu0
  %343 = vmatprep.mubr.f32.mxu0 0.0
  %344 = vmatmul.mubr.f32.gmra.mxu0 %v264
  %v345 = vpop.f32.mrf.mxu0
  %v346 = vadd.f32 0.0, %v345
  %v347 = vpop.f32.mrf.mxu0
  %348 = vmatprep.mubr.f32.mxu0 0.0
  %349 = vmatmul.mubr.f32.gmra.mxu0 %v267
  %v350 = vpop.f32.mrf.mxu0
  %v351 = vadd.f32 0.0, %v350
  %v352 = vpop.f32.mrf.mxu0
  %353 = vdwg.mxu0
  %v354 = vadd.f32 %v228, %v336
  %v355 = vadd.f32 %v233, %v341
  %v356 = vadd.f32 %v238, %v346
  %v357 = vadd.f32 %v243, %v351
  %v358 = vld [vmem:[%s2] sm:$0x1]
  %v360 = vlaneseq
  %v361 = vshrl.u32 %v360, 7
  %v362 = vsub.s32 0, %v361
  %v363 = vrot.slane %v358, %v362
  %v365 = vadd.f32 %v354, %v363
  %v366 = vadd.f32 %v355, %v363
  %v367 = vadd.f32 %v356, %v363
  %v368 = vadd.f32 %v357, %v363
  %v369 = vld [vmem:[%s3] sm:$0xff]
  %v370 = vld [vmem:[%s3 + $0x8] sm:$0xff]
  %v371 = vld [vmem:[%s3 + $0x10] sm:$0xff]
  %v372 = vld [vmem:[%s3 + $0x18] sm:$0xff]
  %v373 = vadd.f32 %v365, %v369
  %v374 = vadd.f32 %v366, %v370
  %v375 = vadd.f32 %v367, %v371
  %v376 = vadd.f32 %v368, %v372
  %377 = vst [vmem:[%s4] sm:$0xff] %v373
  %378 = vst [vmem:[%s4 + $0x8] sm:$0xff] %v374
  %379 = vst [vmem:[%s4 + $0x10] sm:$0xff] %v375
  %380 = vst [vmem:[%s4 + $0x18] sm:$0xff] %v376
  // Predicated region
  $region18: #{conv3x3_add.1} parent=0 // pred_check
    _
  $region19: #{conv3x3_add.1} parent=0 // pred_check_branch
    %382 = sbr.rel (0) target = $region21
  $region20: #{conv3x3_add.1} parent=0 // pred_region
    _
  $region21: #{conv3x3_add.1} parent=0 // pred_fallthru
    _
  // Predicated region
  $region22: #{conv3x3_add.1} parent=0 // pred_check
    _
  $region23: #{conv3x3_add.1} parent=0 // pred_check_branch
    %384 = sbr.rel (0) target = $region25
  $region24: #{conv3x3_add.1} parent=0 // pred_region
    _
  $region25: #{conv3x3_add.1} parent=0 // pred_fallthru
    _

</llo_original>
